<compile_context>
chip_gen: v6e
topology: v6e:2x2x1
jax: 0.10.0
libtpu: 0.0.40
codegen_flags: <defaults>
</compile_context>

<pallas_src>
import functools

import jax
import jax.numpy as jnp
from jax import lax
from jax.experimental import pallas as pl
from jax.experimental.pallas import tpu as pltpu


def cnn_layer_kernel(x_ref, w1_ref, w2_ref, b1_ref, b2_ref, o_ref, xpad_ref,
                     *, kernel_size, matmul_dtype):
    """One batch tile per grid step.

    x_ref    : (Bt, C_in, L)        f32   input tile (natural layout; also the residual)
    w1_ref   : (K, F_large, C_in)   bf16  conv weight, tap-major
    w2_ref   : (F_small, F_large)   bf16  1x1 'reduce' conv weight
    b1_ref   : (F_large, 1)         f32   conv bias
    b2_ref   : (F_small, 1)         f32   reduce bias
    o_ref    : (Bt, F_small, L)     f32   output tile (final layout, no wrapper transpose)
    xpad_ref : (Bt, C_in, L+2*pad)  f32   VMEM scratch for in-kernel 'same' padding
    """
    bt, c_in, L = x_ref.shape
    f_large = w1_ref.shape[1]
    f_small = w2_ref.shape[0]
    pad = kernel_size // 2

    x = x_ref[...]                                            # f32, reused as residual

    # In-kernel 'same' padding (replaces the wrapper-side im2col slab): zero the
    # scratch, drop the tile in the middle.  Padding is per-sequence by construction
    # because the lane axis is one sequence's length.
    xpad_ref[...] = jnp.zeros(xpad_ref.shape, xpad_ref.dtype)
    xpad_ref[:, :, pad:pad + L] = x

    # Conv1d as K shifted-tap batched matmuls accumulated in f32.  Taps are static
    # lane-offset slices of the padded VMEM scratch -> no extra HBM traffic; the
    # tiny matmul shapes are fine because the MXU has large slack here.
    h = jnp.zeros((bt, f_large, L), jnp.float32)
    for k in range(kernel_size):
        tap = xpad_ref[:, :, k:k + L].astype(matmul_dtype)    # (Bt, C_in, L)
        w_k = jnp.broadcast_to(w1_ref[k], (bt, f_large, c_in))
        h = h + jnp.einsum("bfc,bcl->bfl", w_k, tap,
                           preferred_element_type=jnp.float32)
    h = jnp.maximum(h + b1_ref[...][None, :, :], 0.0)         # conv bias + ReLU (f32)

    # 1x1 reduce conv + bias + ReLU.
    w2b = jnp.broadcast_to(w2_ref[...], (bt, f_small, f_large))
    y = jnp.einsum("bgf,bfl->bgl", w2b, h.astype(matmul_dtype),
                   preferred_element_type=jnp.float32)
    y = jnp.maximum(y + b2_ref[...][None, :, :], 0.0)

    # Residual add in f32 (valid: input_channels == small_features) and store the
    # final (B, F_small, L) layout directly.
    o_ref[...] = (y + x).astype(o_ref.dtype)


def _pick_batch_tile(B, C_in, L, *, target_bytes=1 << 20, min_grid=2):
    """Largest batch tile that (a) divides B, (b) keeps the f32 x block <= target_bytes
    (amortizes the ~0.35us/step overhead), and (c) leaves >= min_grid grid steps when B
    allows it (v7x has 2 TensorCores; >=2 steps also keeps the DMA pipeline busy)."""
    per_batch = max(1, C_in * L * 4)
    bt = max(1, min(B, target_bytes // per_batch))
    while B % bt:
        bt -= 1
    while B // bt < min_grid and bt > 1:
        bt -= 1
        while B % bt:
            bt -= 1
    return bt


def cnn_layer_forward(x, w1, b1, w2, b2, *, matmul_dtype=jnp.bfloat16):
    """x: (B, C_in, L) f32 -> (B, F_small, L) f32.
    Implements the default CNNLayer config (pool_size=None, batch_norm=False)."""
    B, C_in, L = x.shape
    F_large, C_in_w, K = w1.shape
    F_small = w2.shape[0]
    assert C_in_w == C_in
    assert K % 2 == 1, "'same' padding via K//2 assumes odd kernel_size"
    assert C_in == F_small, "residual path requires input_channels == small_features"
    pad = K // 2

    # Tiny weight-side relayouts only -- no input-sized wrapper passes.
    w1_taps = jnp.transpose(w1, (2, 0, 1)).astype(matmul_dtype)   # (K, F_large, C_in)
    w2_m = w2.astype(matmul_dtype)                                # (F_small, F_large)
    b1_col = b1.astype(jnp.float32).reshape(F_large, 1)
    b2_col = b2.astype(jnp.float32).reshape(F_small, 1)

    Bt = _pick_batch_tile(B, C_in, L)
    grid = (B // Bt,)

    kernel = functools.partial(cnn_layer_kernel, kernel_size=K,
                               matmul_dtype=matmul_dtype)

    return pl.pallas_call(
        kernel,
        out_shape=jax.ShapeDtypeStruct((B, F_small, L), jnp.float32),
        grid_spec=pltpu.PrefetchScalarGridSpec(
            num_scalar_prefetch=0,
            grid=grid,
            in_specs=[
                pl.BlockSpec((Bt, C_in, L), lambda b: (b, 0, 0)),
                pl.BlockSpec((K, F_large, C_in), lambda b: (0, 0, 0)),
                pl.BlockSpec((F_small, F_large), lambda b: (0, 0)),
                pl.BlockSpec((F_large, 1), lambda b: (0, 0)),
                pl.BlockSpec((F_small, 1), lambda b: (0, 0)),
            ],
            out_specs=pl.BlockSpec((Bt, F_small, L), lambda b: (b, 0, 0)),
            scratch_shapes=[pltpu.VMEM((Bt, C_in, L + 2 * pad), jnp.float32)],
        ),
        compiler_params=pltpu.CompilerParams(
            dimension_semantics=("parallel",)),
    )(x, w1_taps, w2_m, b1_col, b2_col)


def reference_forward(x, w1, b1, w2, b2):
    """Pure-JAX f32 reference mirroring the PyTorch forward (default config)."""
    K = w1.shape[2]
    h = lax.conv_general_dilated(
        x, w1, window_strides=(1,), padding=[(K // 2, K // 2)],
        dimension_numbers=("NCH", "OIH", "NCH"))
    h = jax.nn.relu(h + b1[None, :, None])
    y = lax.conv_general_dilated(
        h, w2[:, :, None], window_strides=(1,), padding=[(0, 0)],
        dimension_numbers=("NCH", "OIH", "NCH"))
    y = jax.nn.relu(y + b2[None, :, None])
    return y + x                                               # residual


if __name__ == "__main__":
    # Small shapes consistent with the module (input_channels == small_features
    # so the residual path is active).
    B, C_in, L = 2, 4, 16
    F_large, F_small, K = 32, 4, 3

    key = jax.random.PRNGKey(0)
    kx, kw1, kb1, kw2, kb2 = jax.random.split(key, 5)

    x = jax.random.normal(kx, (B, C_in, L), dtype=jnp.float32)
    # Deterministic synthetic parameters (PyTorch-like scale, not a checkpoint load).
    w1 = jax.random.normal(kw1, (F_large, C_in, K), dtype=jnp.float32) * 0.2
    b1 = jax.random.normal(kb1, (F_large,), dtype=jnp.float32) * 0.1
    w2 = jax.random.normal(kw2, (F_small, F_large), dtype=jnp.float32) * 0.2
    b2 = jax.random.normal(kb2, (F_small,), dtype=jnp.float32) * 0.1

    out = jax.block_until_ready(cnn_layer_forward(x, w1, b1, w2, b2))
    ref = jax.block_until_ready(reference_forward(x, w1, b1, w2, b2))

    assert out.shape == (B, F_small, L)
    # bf16 MXU operands (per perf review) -> tolerance widened vs the f32 reference;
    # the residual add and final store remain f32.
    assert jnp.allclose(out, ref, atol=2e-2, rtol=2e-2), "mismatch vs JAX reference"

    print("KERNEL_OK")
</pallas_src>

<mosaic_0001>
module attributes {stable_mosaic.version = 11 : i64} {
  func.func @cnn_layer_kernel(%arg0: i32, %arg1: memref<1x4x16xf32, #tpu.memory_space<vmem>>, %arg2: memref<3x32x4xbf16, #tpu.memory_space<vmem>>, %arg3: memref<4x32xbf16, #tpu.memory_space<vmem>>, %arg4: memref<32x1xf32, #tpu.memory_space<vmem>>, %arg5: memref<4x1xf32, #tpu.memory_space<vmem>>, %arg6: memref<1x4x16xf32, #tpu.memory_space<vmem>>, %arg7: memref<1x4x18xf32, #tpu.memory_space<vmem>>) attributes {dimension_semantics = [#tpu.dimension_semantics<parallel>], iteration_bounds = array<i64: 2>, scalar_prefetch = 0 : i64, scratch_operands = 1 : i64, tpu.core_type = #tpu.core_type<tc>, window_params = [{transform_indices = @transform_0, window_bounds = array<i64: 1, 4, 16>}, {pipeline_mode = #tpu.pipeline_mode<synchronous>, transform_indices = @transform_1, window_bounds = array<i64: 3, 32, 4>}, {pipeline_mode = #tpu.pipeline_mode<synchronous>, transform_indices = @transform_2, window_bounds = array<i64: 4, 32>}, {pipeline_mode = #tpu.pipeline_mode<synchronous>, transform_indices = @transform_3, window_bounds = array<i64: 32, 1>}, {pipeline_mode = #tpu.pipeline_mode<synchronous>, transform_indices = @transform_4, window_bounds = array<i64: 4, 1>}, {transform_indices = @transform_5, window_bounds = array<i64: 1, 4, 16>}]} {
    %c0 = arith.constant 0 : index
    %c0_0 = arith.constant 0 : index
    %c0_1 = arith.constant 0 : index
    %0 = vector.load %arg1[%c0, %c0_0, %c0_1] : memref<1x4x16xf32, #tpu.memory_space<vmem>>, vector<1x4x16xf32>
    %cst = arith.constant 0.000000e+00 : f32
    %1 = vector.broadcast %cst : f32 to vector<1x4x18xf32>
    %c0_2 = arith.constant 0 : index
    %c0_3 = arith.constant 0 : index
    %c0_4 = arith.constant 0 : index
    %2 = vector.load %arg7[%c0_2, %c0_3, %c0_4] : memref<1x4x18xf32, #tpu.memory_space<vmem>>, vector<1x4x18xf32>
    tpu.vector_store %arg7[%c0_2, %c0_3, %c0_4], %1 {strides = array<i32>} : memref<1x4x18xf32, #tpu.memory_space<vmem>>, vector<1x4x18xf32>,
    %c0_5 = arith.constant 0 : index
    %c0_6 = arith.constant 0 : index
    %c1 = arith.constant 1 : index
    %3 = vector.load %arg7[%c0_5, %c0_6, %c1] : memref<1x4x18xf32, #tpu.memory_space<vmem>>, vector<1x4x16xf32>
    tpu.vector_store %arg7[%c0_5, %c0_6, %c1], %0 {strides = array<i32>} : memref<1x4x18xf32, #tpu.memory_space<vmem>>, vector<1x4x16xf32>,
    %cst_7 = arith.constant 0.000000e+00 : f32
    %4 = vector.broadcast %cst_7 : f32 to vector<1x32x16xf32>
    %c0_8 = arith.constant 0 : index
    %c0_9 = arith.constant 0 : index
    %c0_10 = arith.constant 0 : index
    %5 = vector.load %arg7[%c0_8, %c0_9, %c0_10] : memref<1x4x18xf32, #tpu.memory_space<vmem>>, vector<1x4x16xf32>
    %6 = arith.truncf %5 : vector<1x4x16xf32> to vector<1x4x16xbf16>
    %c0_11 = arith.constant 0 : index
    %c0_12 = arith.constant 0 : index
    %c0_13 = arith.constant 0 : index
    %7 = vector.load %arg2[%c0_11, %c0_12, %c0_13] : memref<3x32x4xbf16, #tpu.memory_space<vmem>>, vector<1x32x4xbf16>
    %8 = vector.shape_cast %7 : vector<1x32x4xbf16> to vector<32x4xbf16>
    %9 = vector.shape_cast %8 : vector<32x4xbf16> to vector<1x32x4xbf16>
    "tpu.trace_start"() <{level = 10 : i32, message = "bfc,bcl->bfl"}> : () -> ()
    %cst_14 = arith.constant dense<0.000000e+00> : vector<1x32x16xf32>
    %10 = tpu.matmul %9, %6, %cst_14 {dimension_numbers = #tpu.dot_dimension_numbers<[2], [1], [1], [2], [0, 0, 0, 1, 1, 2], [0], [0]>} : vector<1x32x4xbf16>, vector<1x4x16xbf16>, vector<1x32x16xf32> -> vector<1x32x16xf32>
    "tpu.trace_stop"() : () -> ()
    %11 = arith.addf %4, %10 : vector<1x32x16xf32>
    %c0_15 = arith.constant 0 : index
    %c0_16 = arith.constant 0 : index
    %c1_17 = arith.constant 1 : index
    %12 = vector.load %arg7[%c0_15, %c0_16, %c1_17] : memref<1x4x18xf32, #tpu.memory_space<vmem>>, vector<1x4x16xf32>
    %13 = arith.truncf %12 : vector<1x4x16xf32> to vector<1x4x16xbf16>
    %c1_18 = arith.constant 1 : index
    %c0_19 = arith.constant 0 : index
    %c0_20 = arith.constant 0 : index
    %14 = vector.load %arg2[%c1_18, %c0_19, %c0_20] : memref<3x32x4xbf16, #tpu.memory_space<vmem>>, vector<1x32x4xbf16>
    %15 = vector.shape_cast %14 : vector<1x32x4xbf16> to vector<32x4xbf16>
    %16 = vector.shape_cast %15 : vector<32x4xbf16> to vector<1x32x4xbf16>
    "tpu.trace_start"() <{level = 10 : i32, message = "bfc,bcl->bfl"}> : () -> ()
    %cst_21 = arith.constant dense<0.000000e+00> : vector<1x32x16xf32>
    %17 = tpu.matmul %16, %13, %cst_21 {dimension_numbers = #tpu.dot_dimension_numbers<[2], [1], [1], [2], [0, 0, 0, 1, 1, 2], [0], [0]>} : vector<1x32x4xbf16>, vector<1x4x16xbf16>, vector<1x32x16xf32> -> vector<1x32x16xf32>
    "tpu.trace_stop"() : () -> ()
    %18 = arith.addf %11, %17 : vector<1x32x16xf32>
    %c0_22 = arith.constant 0 : index
    %c0_23 = arith.constant 0 : index
    %c2 = arith.constant 2 : index
    %19 = vector.load %arg7[%c0_22, %c0_23, %c2] : memref<1x4x18xf32, #tpu.memory_space<vmem>>, vector<1x4x16xf32>
    %20 = arith.truncf %19 : vector<1x4x16xf32> to vector<1x4x16xbf16>
    %c2_24 = arith.constant 2 : index
    %c0_25 = arith.constant 0 : index
    %c0_26 = arith.constant 0 : index
    %21 = vector.load %arg2[%c2_24, %c0_25, %c0_26] : memref<3x32x4xbf16, #tpu.memory_space<vmem>>, vector<1x32x4xbf16>
    %22 = vector.shape_cast %21 : vector<1x32x4xbf16> to vector<32x4xbf16>
    %23 = vector.shape_cast %22 : vector<32x4xbf16> to vector<1x32x4xbf16>
    "tpu.trace_start"() <{level = 10 : i32, message = "bfc,bcl->bfl"}> : () -> ()
    %cst_27 = arith.constant dense<0.000000e+00> : vector<1x32x16xf32>
    %24 = tpu.matmul %23, %20, %cst_27 {dimension_numbers = #tpu.dot_dimension_numbers<[2], [1], [1], [2], [0, 0, 0, 1, 1, 2], [0], [0]>} : vector<1x32x4xbf16>, vector<1x4x16xbf16>, vector<1x32x16xf32> -> vector<1x32x16xf32>
    "tpu.trace_stop"() : () -> ()
    %25 = arith.addf %18, %24 : vector<1x32x16xf32>
    %c0_28 = arith.constant 0 : index
    %c0_29 = arith.constant 0 : index
    %26 = vector.load %arg4[%c0_28, %c0_29] : memref<32x1xf32, #tpu.memory_space<vmem>>, vector<32x1xf32>
    %27 = vector.shape_cast %26 : vector<32x1xf32> to vector<1x32x1xf32>
    %28 = vector.broadcast %27 : vector<1x32x1xf32> to vector<1x32x16xf32>
    %29 = arith.addf %25, %28 : vector<1x32x16xf32>
    %cst_30 = arith.constant 0.000000e+00 : f32
    %30 = vector.broadcast %cst_30 : f32 to vector<1x32x16xf32>
    %31 = arith.maximumf %29, %30 : vector<1x32x16xf32>
    %c0_31 = arith.constant 0 : index
    %c0_32 = arith.constant 0 : index
    %32 = vector.load %arg3[%c0_31, %c0_32] : memref<4x32xbf16, #tpu.memory_space<vmem>>, vector<4x32xbf16>
    %33 = vector.shape_cast %32 : vector<4x32xbf16> to vector<1x4x32xbf16>
    %34 = arith.truncf %31 : vector<1x32x16xf32> to vector<1x32x16xbf16>
    "tpu.trace_start"() <{level = 10 : i32, message = "bgf,bfl->bgl"}> : () -> ()
    %cst_33 = arith.constant dense<0.000000e+00> : vector<1x4x16xf32>
    %35 = tpu.matmul %33, %34, %cst_33 {dimension_numbers = #tpu.dot_dimension_numbers<[2], [1], [1], [2], [0, 0, 0, 1, 1, 2], [0], [0]>} : vector<1x4x32xbf16>, vector<1x32x16xbf16>, vector<1x4x16xf32> -> vector<1x4x16xf32>
    "tpu.trace_stop"() : () -> ()
    %c0_34 = arith.constant 0 : index
    %c0_35 = arith.constant 0 : index
    %36 = vector.load %arg5[%c0_34, %c0_35] : memref<4x1xf32, #tpu.memory_space<vmem>>, vector<4x1xf32>
    %37 = vector.shape_cast %36 : vector<4x1xf32> to vector<1x4x1xf32>
    %38 = vector.broadcast %37 : vector<1x4x1xf32> to vector<1x4x16xf32>
    %39 = arith.addf %35, %38 : vector<1x4x16xf32>
    %cst_36 = arith.constant 0.000000e+00 : f32
    %40 = vector.broadcast %cst_36 : f32 to vector<1x4x16xf32>
    %41 = arith.maximumf %39, %40 : vector<1x4x16xf32>
    %42 = arith.addf %41, %0 : vector<1x4x16xf32>
    %c0_37 = arith.constant 0 : index
    %c0_38 = arith.constant 0 : index
    %c0_39 = arith.constant 0 : index
    %43 = vector.load %arg6[%c0_37, %c0_38, %c0_39] : memref<1x4x16xf32, #tpu.memory_space<vmem>>, vector<1x4x16xf32>
    tpu.vector_store %arg6[%c0_37, %c0_38, %c0_39], %42 {strides = array<i32>} : memref<1x4x16xf32, #tpu.memory_space<vmem>>, vector<1x4x16xf32>,
    return
  }
  func.func @transform_0(%arg0: i32) -> (i32, i32, i32) {
    %c0_i32 = arith.constant 0 : i32
    %c0_i32_0 = arith.constant 0 : i32
    %c0_i32_1 = arith.constant 0 : i32
    return %arg0, %c0_i32, %c0_i32_0 : i32, i32, i32
  }
  func.func @transform_1(%arg0: i32) -> (i32, i32, i32) {
    %c0_i32 = arith.constant 0 : i32
    %c0_i32_0 = arith.constant 0 : i32
    %c0_i32_1 = arith.constant 0 : i32
    %c0_i32_2 = arith.constant 0 : i32
    return %c0_i32, %c0_i32_0, %c0_i32_1 : i32, i32, i32
  }
  func.func @transform_2(%arg0: i32) -> (i32, i32) {
    %c0_i32 = arith.constant 0 : i32
    %c0_i32_0 = arith.constant 0 : i32
    %c0_i32_1 = arith.constant 0 : i32
    return %c0_i32, %c0_i32_0 : i32, i32
  }
  func.func @transform_3(%arg0: i32) -> (i32, i32) {
    %c0_i32 = arith.constant 0 : i32
    %c0_i32_0 = arith.constant 0 : i32
    %c0_i32_1 = arith.constant 0 : i32
    return %c0_i32, %c0_i32_0 : i32, i32
  }
  func.func @transform_4(%arg0: i32) -> (i32, i32) {
    %c0_i32 = arith.constant 0 : i32
    %c0_i32_0 = arith.constant 0 : i32
    %c0_i32_1 = arith.constant 0 : i32
    return %c0_i32, %c0_i32_0 : i32, i32
  }
  func.func @transform_5(%arg0: i32) -> (i32, i32, i32) {
    %c0_i32 = arith.constant 0 : i32
    %c0_i32_0 = arith.constant 0 : i32
    %c0_i32_1 = arith.constant 0 : i32
    return %arg0, %c0_i32, %c0_i32_0 : i32, i32, i32
  }
}

</mosaic_0001>

<llo_original>
// kernel: tpu_custom_call.1
$region0: #{tpu_custom_call.1}
  #allocation0 [shape = 'u32[]', space=smem, size = 0x4, offset = 0x4, fixed_abs, tag = 'smem constant byte address 0x4 - core index']
  #allocation1 [shape = 'u32[144,128]{1,0:T(1,128)}', space=vmem, size = 0x12000, scoped, tag = 'internal scratch']
  #allocation2 [shape = 'f32[1,4,18]{2,1,0:T(4,128)}', space=vmem, size = 0x800, scoped, tag = 'scratch operand']
  %s0 = inlined_call_operand.vmem [shape: f32[2,4,16], index: 0, kind: input, shape index: {}]
  %s1 = inlined_call_operand.vmem [shape: bf16[3,32,4], index: 1, kind: input, shape index: {}]
  %s2 = inlined_call_operand.vmem [shape: bf16[4,32], index: 2, kind: input, shape index: {}]
  %s3 = inlined_call_operand.vmem [shape: f32[32,1], index: 3, kind: input, shape index: {}]
  %s4 = inlined_call_operand.vmem [shape: f32[4,1], index: 4, kind: input, shape index: {}]
  %s5 = inlined_call_operand.hbm [shape: f32[2,4,16], index: 5, kind: output, shape index: {}]
  %s6 = sld [smem:[#allocation0]]
  $region53: #{tpu_custom_call.1} parent=0
    _
  %s8 = ssub.s32 1, %s6
  %s9 = scalar_select 0, %s8, %s6
  $region1: #{tpu_custom_call.1} parent=0
    #allocation3 [shape = 'u8[4096]{0}', space=vmem, size = 0x1000, scoped, tag = 'output window, operand 0']
    #allocation4 [shape = 's32[2]{0}', space=sflag, size = 0x8, scoped, tag = 'scoped memory for tpu_custom_call.1']
    %10 = vsyncpa [#allocation4], 0
    %s11 = scalar_lea.sflag [#allocation4], 1
    %12 = vsyncpa %s11, 0
    loop: start=0, step=1, limit=4
    $region2: #{tpu_custom_call.1} parent=1 // loop_pre_header
      _
    $region3: #{tpu_custom_call.1} parent=1 // loop_header
      %s14 = sphi 0, %s18
      %p15 = scmp.ge.s32.totalorder %s14, 4
      %s24 = sphi 0, %s26
      %s27 = sphi 0, %s24
      %s28 = sphi 0, %s27
      %s44 = sphi 0, %s28
      %s48 = sphi 0, %s48
      %s50 = sphi 0, %s48
      %s51 = sphi 0, %s50
      %s65 = sphi 0, %s51
      %s69 = sphi 0, %s69
      %s71 = sphi 0, %s69
      %s72 = sphi 0, %s71
      %s86 = sphi 0, %s72
      %s90 = sphi 0, %s90
      %s92 = sphi 0, %s90
      %s93 = sphi 0, %s92
      %s107 = sphi 0, %s93
      %s111 = sphi 0, %s111
      %s113 = sphi 0, %s111
      %s114 = sphi 0, %s113
      %s128 = sphi 0, %s114
      %s134 = sphi 0, %s136
      %s137 = sphi 0, %s134
      %s138 = sphi 0, %s137
      %s154 = sphi 0, %s138
    $region4: #{tpu_custom_call.1} parent=1 // loop_header_branch
      %17 = sbr.rel (%p15) target = $region8
    $region5: #{tpu_custom_call.1} parent=1 // loop_body
      %s19 = ssub.s32 %s14, 1
      %s20 = ssub.s32 %s14, 2
      %s21 = sadd.s32 %s14, 1
      %s22 = ssub.s32 %s14, %s21
      %p23 = scmp.eq.s32.totalorder %s22, 0
      %s25 = sadd.s32 %s24, 1
      %s26 = scalar_select %p23, %s24, %s25
      %p29 = pneg %p23
      %p30 = scmp.eq.s32.totalorder %s14, 1
      %p31 = por %p29, %p30
      %p32 = scmp.ne.s32.totalorder %s24, %s27
      %p33 = scmp.eq.s32.totalorder %s14, 0
      %p34 = por %p32, %p33
      %p35 = scmp.ne.s32.totalorder %s24, %s27
      %p36 = scmp.eq.s32.totalorder %s19, 1
      %p37 = por %p35, %p36
      %p38 = scmp.ne.s32.totalorder %s27, %s28
      %p39 = scmp.eq.s32.totalorder %s19, 0
      %p40 = por %p38, %p39
      %p41 = scmp.ne.s32.totalorder %s27, %s28
      %p42 = scmp.eq.s32.totalorder %s20, 1
      %p43 = por %p41, %p42
      %p45 = scmp.ne.s32.totalorder %s28, %s44
      %p46 = scmp.eq.s32.totalorder %s20, 0
      %p47 = por %p45, %p46
      %s49 = sadd.s32 %s48, 1
      %p52 = scmp.eq.s32.totalorder %s14, 1
      %p53 = scmp.ne.s32.totalorder %s48, %s50
      %p54 = scmp.eq.s32.totalorder %s14, 0
      %p55 = por %p53, %p54
      %p56 = scmp.ne.s32.totalorder %s48, %s50
      %p57 = scmp.eq.s32.totalorder %s19, 1
      %p58 = por %p56, %p57
      %p59 = scmp.ne.s32.totalorder %s50, %s51
      %p60 = scmp.eq.s32.totalorder %s19, 0
      %p61 = por %p59, %p60
      %p62 = scmp.ne.s32.totalorder %s50, %s51
      %p63 = scmp.eq.s32.totalorder %s20, 1
      %p64 = por %p62, %p63
      %p66 = scmp.ne.s32.totalorder %s51, %s65
      %p67 = scmp.eq.s32.totalorder %s20, 0
      %p68 = por %p66, %p67
      %s70 = sadd.s32 %s69, 1
      %p73 = scmp.eq.s32.totalorder %s14, 1
      %p74 = scmp.ne.s32.totalorder %s69, %s71
      %p75 = scmp.eq.s32.totalorder %s14, 0
      %p76 = por %p74, %p75
      %p77 = scmp.ne.s32.totalorder %s69, %s71
      %p78 = scmp.eq.s32.totalorder %s19, 1
      %p79 = por %p77, %p78
      %p80 = scmp.ne.s32.totalorder %s71, %s72
      %p81 = scmp.eq.s32.totalorder %s19, 0
      %p82 = por %p80, %p81
      %p83 = scmp.ne.s32.totalorder %s71, %s72
      %p84 = scmp.eq.s32.totalorder %s20, 1
      %p85 = por %p83, %p84
      %p87 = scmp.ne.s32.totalorder %s72, %s86
      %p88 = scmp.eq.s32.totalorder %s20, 0
      %p89 = por %p87, %p88
      %s91 = sadd.s32 %s90, 1
      %p94 = scmp.eq.s32.totalorder %s14, 1
      %p95 = scmp.ne.s32.totalorder %s90, %s92
      %p96 = scmp.eq.s32.totalorder %s14, 0
      %p97 = por %p95, %p96
      %p98 = scmp.ne.s32.totalorder %s90, %s92
      %p99 = scmp.eq.s32.totalorder %s19, 1
      %p100 = por %p98, %p99
      %p101 = scmp.ne.s32.totalorder %s92, %s93
      %p102 = scmp.eq.s32.totalorder %s19, 0
      %p103 = por %p101, %p102
      %p104 = scmp.ne.s32.totalorder %s92, %s93
      %p105 = scmp.eq.s32.totalorder %s20, 1
      %p106 = por %p104, %p105
      %p108 = scmp.ne.s32.totalorder %s93, %s107
      %p109 = scmp.eq.s32.totalorder %s20, 0
      %p110 = por %p108, %p109
      %s112 = sadd.s32 %s111, 1
      %p115 = scmp.eq.s32.totalorder %s14, 1
      %p116 = scmp.ne.s32.totalorder %s111, %s113
      %p117 = scmp.eq.s32.totalorder %s14, 0
      %p118 = por %p116, %p117
      %p119 = scmp.ne.s32.totalorder %s111, %s113
      %p120 = scmp.eq.s32.totalorder %s19, 1
      %p121 = por %p119, %p120
      %p122 = scmp.ne.s32.totalorder %s113, %s114
      %p123 = scmp.eq.s32.totalorder %s19, 0
      %p124 = por %p122, %p123
      %p125 = scmp.ne.s32.totalorder %s113, %s114
      %p126 = scmp.eq.s32.totalorder %s20, 1
      %p127 = por %p125, %p126
      %p129 = scmp.ne.s32.totalorder %s114, %s128
      %p130 = scmp.eq.s32.totalorder %s20, 0
      %p131 = por %p129, %p130
      %s132 = ssub.s32 %s14, %s21
      %p133 = scmp.eq.s32.totalorder %s132, 0
      %s135 = sadd.s32 %s134, 1
      %s136 = scalar_select %p133, %s134, %s135
      %p139 = pneg %p133
      %p140 = scmp.eq.s32.totalorder %s14, 1
      %p141 = por %p139, %p140
      %p142 = scmp.ne.s32.totalorder %s134, %s137
      %p143 = scmp.eq.s32.totalorder %s14, 0
      %p144 = por %p142, %p143
      %p145 = scmp.ne.s32.totalorder %s134, %s137
      %p146 = scmp.eq.s32.totalorder %s19, 1
      %p147 = por %p145, %p146
      %p148 = scmp.ne.s32.totalorder %s137, %s138
      %p149 = scmp.eq.s32.totalorder %s19, 0
      %p150 = por %p148, %p149
      %p151 = scmp.ne.s32.totalorder %s137, %s138
      %p152 = scmp.eq.s32.totalorder %s20, 1
      %p153 = por %p151, %p152
      %p155 = scmp.ne.s32.totalorder %s138, %s154
      %p156 = scmp.eq.s32.totalorder %s20, 0
      %p157 = por %p155, %p156
      %p158 = scmp.le.s32.totalorder 1, %s14
      %p159 = scmp.lt.s32.totalorder %s14, 3
      %p160 = pnand %p158, %p159
      %p161 = pneg %p160
      // Predicated region
      $region9: #{tpu_custom_call.1} parent=5 // pred_check
        _
      $region10: #{tpu_custom_call.1} parent=5 // pred_check_branch
        %163 = sbr.rel (%p160) target = $region12
      $region11: #{tpu_custom_call.1} parent=5 // pred_region
        %s164 = ssub.s32 %s14, 1
        // Predicated region
        $region13: #{tpu_custom_call.1} parent=11 // pred_check
          %p165 = pneg %p61
        $region14: #{tpu_custom_call.1} parent=11 // pred_check_branch
          %167 = sbr.rel (%p165) target = $region16
        $region15: #{tpu_custom_call.1} parent=11 // pred_region
          _
        $region16: #{tpu_custom_call.1} parent=11 // pred_fallthru
          _
        // Predicated region
        $region17: #{tpu_custom_call.1} parent=11 // pred_check
          %p168 = pneg %p82
        $region18: #{tpu_custom_call.1} parent=11 // pred_check_branch
          %170 = sbr.rel (%p168) target = $region20
        $region19: #{tpu_custom_call.1} parent=11 // pred_region
          _
        $region20: #{tpu_custom_call.1} parent=11 // pred_fallthru
          _
        // Predicated region
        $region21: #{tpu_custom_call.1} parent=11 // pred_check
          %p171 = pneg %p103
        $region22: #{tpu_custom_call.1} parent=11 // pred_check_branch
          %173 = sbr.rel (%p171) target = $region24
        $region23: #{tpu_custom_call.1} parent=11 // pred_region
          _
        $region24: #{tpu_custom_call.1} parent=11 // pred_fallthru
          _
        // Predicated region
        $region25: #{tpu_custom_call.1} parent=11 // pred_check
          %p174 = pneg %p124
        $region26: #{tpu_custom_call.1} parent=11 // pred_check_branch
          %176 = sbr.rel (%p174) target = $region28
        $region27: #{tpu_custom_call.1} parent=11 // pred_region
          _
        $region28: #{tpu_custom_call.1} parent=11 // pred_fallthru
          _
      $region12: #{tpu_custom_call.1} parent=5 // pred_fallthru
        _
      %p177 = scmp.lt.s32.totalorder %s14, 2
      // Predicated region
      $region29: #{tpu_custom_call.1} parent=5 // pred_check
        %p178 = pneg %p177
      $region30: #{tpu_custom_call.1} parent=5 // pred_check_branch
        %180 = sbr.rel (%p178) target = $region32
      $region31: #{tpu_custom_call.1} parent=5 // pred_region
        // Predicated region
        $region33: #{tpu_custom_call.1} parent=31 // pred_check
          %p181 = pneg %p34
        $region34: #{tpu_custom_call.1} parent=31 // pred_check_branch
          %183 = sbr.rel (%p181) target = $region36
        $region35: #{tpu_custom_call.1} parent=31 // pred_region
          %p184 = scmp.lt.s32.totalorder %s14, 1
          %s185 = scalar_select %p184, %s14, 1
          %s186 = smul.addr %s185, 4
          %s187 = scalar_lea.vmem %s0, %s186
        $region36: #{tpu_custom_call.1} parent=31 // pred_fallthru
          _
      $region32: #{tpu_custom_call.1} parent=5 // pred_fallthru
        _
      %p188 = scmp.le.s32.totalorder 1, %s14
      %p189 = scmp.lt.s32.totalorder %s14, 3
      %p190 = pnand %p188, %p189
      %p191 = pneg %p190
      // Predicated region
      $region37: #{tpu_custom_call.1} parent=5 // pred_check
        _
      $region38: #{tpu_custom_call.1} parent=5 // pred_check_branch
        %193 = sbr.rel (%p190) target = $region40
      $region39: #{tpu_custom_call.1} parent=5 // pred_region
        %s194 = ssub.s32 %s14, 1
        %p195 = scmp.lt.s32.totalorder %s19, 1
        %s196 = scalar_select %p195, %s19, 1
        %s197 = smul.addr %s196, 4
        %s198 = scalar_lea.vmem %s0, %s197
        %p199 = pneg %p40
        %p200 = pneg %p37
        %p201 = pneg %p61
        %p202 = pneg %p58
        %p203 = pneg %p82
        %p204 = pneg %p79
        %p205 = pneg %p103
        %p206 = pneg %p100
        %p207 = pneg %p124
        %p208 = pneg %p121
        %p209 = pneg %p150
        %p210 = pneg %p147
        %s211 = sand.u32 %s137, 1
        %s212 = scalar_lea.sflag [#allocation4], %s211
        %s213 = sand.u32 %s137, 1
        %s214 = smul.addr %s213, 4
        %s215 = scalar_lea.vmem [#allocation3], %s214
        %p216 = scmp.lt.s32.totalorder %s19, 1
        %s217 = scalar_select %p216, %s19, 1
        %s218 = smul.addr %s217, 4
        %s219 = scalar_lea.vmem %s0, %s218
        %v221 = vld [vmem:[%s219] sm:$0xf]
        %vm222 = vcmask 142336
        %223 = vst.msk [vmem:[#allocation2] sm:$0xf] %vm222, 0.0
        %225 = vrot.lane.b32.xlu0 %v221, 1
        %v226 = vpop.permute.xlu0 %225
        %vm228 = vcmask 134152
        %229 = vst.msk [vmem:[#allocation2] sm:$0xf] %vm228, %v226
        %v230 = vld [vmem:[#allocation2] sm:$0xf]
        %v231 = vpack.c.bf16 %v230, %v230
        %v232 = vld [vmem:[%s1] sm:$0xf]
        %v233 = vld [vmem:[%s1 + $0x4] sm:$0xf]
        %v234 = vld [vmem:[%s1 + $0x8] sm:$0xf]
        %v235 = vld [vmem:[%s1 + $0xc] sm:$0xf]
        %v236 = vld [vmem:[#allocation2] sm:$0xf]
        %v237 = vpack.c.bf16 %v236, %v236
        %s238 = scalar_lea.vmem %s1, 16
        %v239 = vld [vmem:[%s238] sm:$0xf]
        %v240 = vld [vmem:[%s238 + $0x4] sm:$0xf]
        %v241 = vld [vmem:[%s238 + $0x8] sm:$0xf]
        %v242 = vld [vmem:[%s238 + $0xc] sm:$0xf]
        %v247 = vunpack.c.l.b16 %v239
        %v248 = vunpack.c.l.b16 %v240
        %v249 = vunpack.c.l.b16 %v241
        %v250 = vunpack.c.l.b16 %v242
        %v251 = vpack.c.b16 %v248, %v247
        %v252 = vpack.c.b16 %v250, %v249
        %254 = vrot.lane.b32.xlu0 %v237, 127
        %v255 = vpop.permute.xlu0 %254
        %vm256 = vcmask 31744
        %v258 = vsel %vm256, %v251, 0
        %v261 = vsel %vm256, %v252, 0
        %vm263 = vcmask 1041408
        %v265 = vsel %vm263, %v255, 0
        %267 = vmatprep.subr.bf16.mxu0 0
        %268 = vmatpush1.bf16.msra.mxu0 0
        %269 = vmatprep.subr.bf16.mxu0 0
        %270 = vmatpush1.bf16.msra.mxu0 0
        %271 = vmatprep.subr.bf16.mxu0 0
        %272 = vmatpush1.bf16.msra.mxu0 0
        %273 = vmatprep.subr.bf16.mxu0 0
        %274 = vmatpush1.bf16.msra.mxu0 0
        %275 = vmatprep.subr.bf16.mxu0 0
        %276 = vmatpush1.bf16.msra.mxu0 0
        %277 = vmatprep.subr.bf16.mxu0 0
        %278 = vmatpush1.bf16.msra.mxu0 0
        %279 = vmatprep.subr.bf16.mxu0 0
        %280 = vmatpush1.bf16.msra.mxu0 0
        %281 = vmatprep.subr.bf16.mxu0 0
        %282 = vmatpush1.bf16.msra.mxu0 %v265
        %283 = vmatprep.subr.bf16.mxu0 0
        %284 = vmatpush2.bf16.msra.mxu0 0
        %285 = vmatprep.subr.bf16.mxu0 0
        %286 = vmatpush2.bf16.msra.mxu0 0
        %287 = vmatprep.subr.bf16.mxu0 0
        %288 = vmatpush2.bf16.msra.mxu0 0
        %289 = vmatprep.subr.bf16.mxu0 0
        %290 = vmatpush2.bf16.msra.mxu0 0
        %291 = vmatprep.subr.bf16.mxu0 0
        %292 = vmatpush2.bf16.msra.mxu0 0
        %293 = vmatprep.subr.bf16.mxu0 0
        %294 = vmatpush2.bf16.msra.mxu0 0
        %295 = vmatprep.subr.bf16.mxu0 0
        %296 = vmatpush2.bf16.msra.mxu0 0
        %297 = vmatprep.subr.bf16.mxu0 0
        %298 = vmatpush2.bf16.msra.mxu0 0
        %299 = vmatprep.mubr.bf16.mxu0 0
        %300 = vmatmul.mubr.bf16.gmra.mxu0 %v258
        %v301 = vpop.f32.mrf.mxu0
        %v302 = vadd.f32 0.0, %v301
        %v303 = vpop.f32.mrf.mxu0
        %v304 = vpop.f32.mrf.mxu0
        %v305 = vadd.f32 0.0, %v304
        %v306 = vpop.f32.mrf.mxu0
        %307 = vmatprep.mubr.bf16.mxu0 0
        %308 = vmatmul.mubr.bf16.gmra.mxu0 %v261
        %v309 = vpop.f32.mrf.mxu0
        %v310 = vadd.f32 0.0, %v309
        %v311 = vpop.f32.mrf.mxu0
        %v312 = vpop.f32.mrf.mxu0
        %v313 = vadd.f32 0.0, %v312
        %v314 = vpop.f32.mrf.mxu0
        %315 = vdwg.mxu0
        %v320 = vunpack.c.l.b16 %v232
        %v321 = vunpack.c.l.b16 %v233
        %v322 = vunpack.c.l.b16 %v234
        %v323 = vunpack.c.l.b16 %v235
        %v324 = vpack.c.b16 %v321, %v320
        %v325 = vpack.c.b16 %v323, %v322
        %v327 = vsel %vm256, %v324, 0
        %v330 = vsel %vm256, %v325, 0
        %v333 = vsel %vm263, %v231, 0
        %335 = vmatprep.subr.bf16.mxu0 0
        %336 = vmatpush1.bf16.msra.mxu0 0
        %337 = vmatprep.subr.bf16.mxu0 0
        %338 = vmatpush1.bf16.msra.mxu0 0
        %339 = vmatprep.subr.bf16.mxu0 0
        %340 = vmatpush1.bf16.msra.mxu0 0
        %341 = vmatprep.subr.bf16.mxu0 0
        %342 = vmatpush1.bf16.msra.mxu0 0
        %343 = vmatprep.subr.bf16.mxu0 0
        %344 = vmatpush1.bf16.msra.mxu0 0
        %345 = vmatprep.subr.bf16.mxu0 0
        %346 = vmatpush1.bf16.msra.mxu0 0
        %347 = vmatprep.subr.bf16.mxu0 0
        %348 = vmatpush1.bf16.msra.mxu0 0
        %349 = vmatprep.subr.bf16.mxu0 0
        %350 = vmatpush1.bf16.msra.mxu0 %v333
        %351 = vmatprep.subr.bf16.mxu0 0
        %352 = vmatpush2.bf16.msra.mxu0 0
        %353 = vmatprep.subr.bf16.mxu0 0
        %354 = vmatpush2.bf16.msra.mxu0 0
        %355 = vmatprep.subr.bf16.mxu0 0
        %356 = vmatpush2.bf16.msra.mxu0 0
        %357 = vmatprep.subr.bf16.mxu0 0
        %358 = vmatpush2.bf16.msra.mxu0 0
        %359 = vmatprep.subr.bf16.mxu0 0
        %360 = vmatpush2.bf16.msra.mxu0 0
        %361 = vmatprep.subr.bf16.mxu0 0
        %362 = vmatpush2.bf16.msra.mxu0 0
        %363 = vmatprep.subr.bf16.mxu0 0
        %364 = vmatpush2.bf16.msra.mxu0 0
        %365 = vmatprep.subr.bf16.mxu0 0
        %366 = vmatpush2.bf16.msra.mxu0 0
        %367 = vmatprep.mubr.bf16.mxu0 0
        %368 = vmatmul.mubr.bf16.gmra.mxu0 %v327
        %v369 = vpop.f32.mrf.mxu0
        %v370 = vadd.f32 %v302, %v369
        %v371 = vpop.f32.mrf.mxu0
        %v372 = vpop.f32.mrf.mxu0
        %v373 = vadd.f32 %v305, %v372
        %v374 = vpop.f32.mrf.mxu0
        %375 = vmatprep.mubr.bf16.mxu0 0
        %376 = vmatmul.mubr.bf16.gmra.mxu0 %v330
        %v377 = vpop.f32.mrf.mxu0
        %v378 = vadd.f32 %v310, %v377
        %v379 = vpop.f32.mrf.mxu0
        %v380 = vpop.f32.mrf.mxu0
        %v381 = vadd.f32 %v313, %v380
        %v382 = vpop.f32.mrf.mxu0
        %383 = vdwg.mxu0
        %v384 = vld [vmem:[#allocation2] sm:$0xf]
        %v385 = vpack.c.bf16 %v384, %v384
        %s386 = scalar_lea.vmem %s1, 32
        %v387 = vld [vmem:[%s386] sm:$0xf]
        %v388 = vld [vmem:[%s386 + $0x4] sm:$0xf]
        %v389 = vld [vmem:[%s386 + $0x8] sm:$0xf]
        %v390 = vld [vmem:[%s386 + $0xc] sm:$0xf]
        %v395 = vunpack.c.l.b16 %v387
        %v396 = vunpack.c.l.b16 %v388
        %v397 = vunpack.c.l.b16 %v389
        %v398 = vunpack.c.l.b16 %v390
        %v399 = vpack.c.b16 %v396, %v395
        %v400 = vpack.c.b16 %v398, %v397
        %402 = vrot.lane.b32.xlu0 %v385, 126
        %v403 = vpop.permute.xlu0 %402
        %v405 = vsel %vm256, %v399, 0
        %v408 = vsel %vm256, %v400, 0
        %v411 = vsel %vm263, %v403, 0
        %413 = vmatprep.subr.bf16.mxu0 0
        %414 = vmatpush1.bf16.msra.mxu0 0
        %415 = vmatprep.subr.bf16.mxu0 0
        %416 = vmatpush1.bf16.msra.mxu0 0
        %417 = vmatprep.subr.bf16.mxu0 0
        %418 = vmatpush1.bf16.msra.mxu0 0
        %419 = vmatprep.subr.bf16.mxu0 0
        %420 = vmatpush1.bf16.msra.mxu0 0
        %421 = vmatprep.subr.bf16.mxu0 0
        %422 = vmatpush1.bf16.msra.mxu0 0
        %423 = vmatprep.subr.bf16.mxu0 0
        %424 = vmatpush1.bf16.msra.mxu0 0
        %425 = vmatprep.subr.bf16.mxu0 0
        %426 = vmatpush1.bf16.msra.mxu0 0
        %427 = vmatprep.subr.bf16.mxu0 0
        %428 = vmatpush1.bf16.msra.mxu0 %v411
        %429 = vmatprep.subr.bf16.mxu0 0
        %430 = vmatpush2.bf16.msra.mxu0 0
        %431 = vmatprep.subr.bf16.mxu0 0
        %432 = vmatpush2.bf16.msra.mxu0 0
        %433 = vmatprep.subr.bf16.mxu0 0
        %434 = vmatpush2.bf16.msra.mxu0 0
        %435 = vmatprep.subr.bf16.mxu0 0
        %436 = vmatpush2.bf16.msra.mxu0 0
        %437 = vmatprep.subr.bf16.mxu0 0
        %438 = vmatpush2.bf16.msra.mxu0 0
        %439 = vmatprep.subr.bf16.mxu0 0
        %440 = vmatpush2.bf16.msra.mxu0 0
        %441 = vmatprep.subr.bf16.mxu0 0
        %442 = vmatpush2.bf16.msra.mxu0 0
        %443 = vmatprep.subr.bf16.mxu0 0
        %444 = vmatpush2.bf16.msra.mxu0 0
        %445 = vmatprep.mubr.bf16.mxu0 0
        %446 = vmatmul.mubr.bf16.gmra.mxu0 %v405
        %v447 = vpop.f32.mrf.mxu0
        %v448 = vadd.f32 0.0, %v447
        %v449 = vpop.f32.mrf.mxu0
        %v450 = vpop.f32.mrf.mxu0
        %v451 = vadd.f32 0.0, %v450
        %v452 = vpop.f32.mrf.mxu0
        %453 = vmatprep.mubr.bf16.mxu0 0
        %454 = vmatmul.mubr.bf16.gmra.mxu0 %v408
        %v455 = vpop.f32.mrf.mxu0
        %v456 = vadd.f32 0.0, %v455
        %v457 = vpop.f32.mrf.mxu0
        %v458 = vpop.f32.mrf.mxu0
        %v459 = vadd.f32 0.0, %v458
        %v460 = vpop.f32.mrf.mxu0
        %461 = vdwg.mxu0
        %v462 = vadd.f32 %v370, %v448
        %v463 = vadd.f32 %v373, %v451
        %v464 = vadd.f32 %v378, %v456
        %v465 = vadd.f32 %v381, %v459
        %v466 = vld [vmem:[%s3] sm:$0xff]
        %v467 = vld [vmem:[%s3 + $0x8] sm:$0xff]
        %v468 = vld [vmem:[%s3 + $0x10] sm:$0xff]
        %v469 = vld [vmem:[%s3 + $0x18] sm:$0xff]
        %471 = vset.pattern.permute.xlu0 0
        %472 = vperm.xlu0 %471, %v466
        %v473 = vpop.permute.xlu0 %472
        %476 = vset.pattern.permute.xlu0 0
        %477 = vperm.xlu0 %476, %v467
        %v478 = vpop.permute.xlu0 %477
        %481 = vset.pattern.permute.xlu0 0
        %482 = vperm.xlu0 %481, %v468
        %v483 = vpop.permute.xlu0 %482
        %486 = vset.pattern.permute.xlu0 0
        %487 = vperm.xlu0 %486, %v469
        %v488 = vpop.permute.xlu0 %487
        %v490 = vadd.f32 %v462, %v473
        %v491 = vadd.f32 %v463, %v478
        %v492 = vadd.f32 %v464, %v483
        %v493 = vadd.f32 %v465, %v488
        %v494 = vmax.f32 %v490, 0.0
        %v495 = vmax.f32 %v491, 0.0
        %v496 = vmax.f32 %v492, 0.0
        %v497 = vmax.f32 %v493, 0.0
        %v498 = vld [vmem:[%s2] sm:$0x3]
        %v499 = vpack.c.bf16 %v495, %v494
        %v500 = vpack.c.bf16 %v497, %v496
        %v501 = vld [vmem:[%s4] sm:$0xf]
        %503 = vset.pattern.permute.xlu0 0
        %504 = vperm.xlu0 %503, %v501
        %v505 = vpop.permute.xlu0 %504
        %vm507 = vcmask 261120
        %v509 = vsel %vm507, %v498, 0
        %511 = vmatprep.subr.bf16.mxu0 0
        %512 = vmatpush1.bf16.msra.mxu0 0
        %513 = vmatprep.subr.bf16.mxu0 0
        %514 = vmatpush1.bf16.msra.mxu0 0
        %515 = vmatprep.subr.bf16.mxu0 0
        %516 = vmatpush1.bf16.msra.mxu0 0
        %517 = vmatprep.subr.bf16.mxu0 0
        %518 = vmatpush1.bf16.msra.mxu0 0
        %519 = vmatprep.subr.bf16.mxu0 0
        %520 = vmatpush1.bf16.msra.mxu0 0
        %521 = vmatprep.subr.bf16.mxu0 0
        %522 = vmatpush1.bf16.msra.mxu0 0
        %523 = vmatprep.subr.bf16.mxu0 0
        %524 = vmatpush1.bf16.msra.mxu0 %v500
        %525 = vmatprep.subr.bf16.mxu0 0
        %526 = vmatpush1.bf16.msra.mxu0 %v499
        %527 = vmatprep.subr.bf16.mxu0 0
        %528 = vmatpush2.bf16.msra.mxu0 0
        %529 = vmatprep.subr.bf16.mxu0 0
        %530 = vmatpush2.bf16.msra.mxu0 0
        %531 = vmatprep.subr.bf16.mxu0 0
        %532 = vmatpush2.bf16.msra.mxu0 0
        %533 = vmatprep.subr.bf16.mxu0 0
        %534 = vmatpush2.bf16.msra.mxu0 0
        %535 = vmatprep.subr.bf16.mxu0 0
        %536 = vmatpush2.bf16.msra.mxu0 0
        %537 = vmatprep.subr.bf16.mxu0 0
        %538 = vmatpush2.bf16.msra.mxu0 0
        %539 = vmatprep.subr.bf16.mxu0 0
        %540 = vmatpush2.bf16.msra.mxu0 0
        %541 = vmatprep.subr.bf16.mxu0 0
        %542 = vmatpush2.bf16.msra.mxu0 0
        %543 = vmatprep.mubr.bf16.mxu0 0
        %544 = vmatmul.mubr.bf16.gmra.mxu0 %v509
        %v545 = vpop.f32.mrf.mxu0
        %v546 = vadd.f32 %v505, %v545
        %v547 = vpop.f32.mrf.mxu0
        %v548 = vpop.f32.mrf.mxu0
        %v549 = vpop.f32.mrf.mxu0
        %550 = vdwg.mxu0
        %v551 = vmax.f32 %v546, 0.0
        %v552 = vadd.f32 %v551, %v221
        %vm553 = vcmask 125952
        %554 = vst.msk [vmem:[%s215] sm:$0xf] %vm553, %v552
        %s555 = sand.u32 %s137, 1
        %s556 = scalar_lea.sflag [#allocation4], %s555
        %s557 = sand.u32 %s137, 1
        %s558 = smul.addr %s557, 4
        %s559 = scalar_lea.vmem [#allocation3], %s558
        // Predicated region
        $region41: #{tpu_custom_call.1} parent=39 // pred_check
          %p560 = pneg %p147
        $region42: #{tpu_custom_call.1} parent=39 // pred_check_branch
          %562 = sbr.rel (%p560) target = $region44
        $region43: #{tpu_custom_call.1} parent=39 // pred_region
          %s564 = ssub.s32 64, 64
          %565 = vsyncadd %s556, %s564
          %s566 = smul.addr %s19, 64
          %s567 = scalar_lea.hbm %s5, %s566
          %s569 = sshll.u32 %s559, 4
          %s570 = int_to_ptr.vmem [resolvable:$true] %s569
          %572 = dma.vmem_to_hbm [thread:$0]  %s570, 64, %s567, %s556
        $region44: #{tpu_custom_call.1} parent=39 // pred_fallthru
          _
      $region40: #{tpu_custom_call.1} parent=5 // pred_fallthru
        _
      %p573 = scmp.le.s32.totalorder 2, %s14
      // Predicated region
      $region45: #{tpu_custom_call.1} parent=5 // pred_check
        %p574 = pneg %p573
      $region46: #{tpu_custom_call.1} parent=5 // pred_check_branch
        %576 = sbr.rel (%p574) target = $region48
      $region47: #{tpu_custom_call.1} parent=5 // pred_region
        %s577 = ssub.s32 %s14, 2
        // Predicated region
        $region49: #{tpu_custom_call.1} parent=47 // pred_check
          %p578 = pneg %p153
        $region50: #{tpu_custom_call.1} parent=47 // pred_check_branch
          %580 = sbr.rel (%p578) target = $region52
        $region51: #{tpu_custom_call.1} parent=47 // pred_region
          %s581 = sand.u32 %s138, 1
          %s582 = scalar_lea.sflag [#allocation4], %s581
          %s583 = sand.u32 %s138, 1
          %s584 = smul.addr %s583, 4
          %s585 = scalar_lea.vmem [#allocation3], %s584
          %586 = dma.done %s582, 64
        $region52: #{tpu_custom_call.1} parent=47 // pred_fallthru
          _
      $region48: #{tpu_custom_call.1} parent=5 // pred_fallthru
        _
    $region6: #{tpu_custom_call.1} parent=1 // loop_footer
      %s18 = sadd.s32 1, %s14
    $region7: #{tpu_custom_call.1} parent=1 // loop_footer_branch
      %13 = sbr.rel target = $region3
    $region8: #{tpu_custom_call.1} parent=1 // loop_exit
      _
    %587 = vsyncpa [#allocation4], 1
    %s588 = scalar_lea.sflag [#allocation4], 1
    %589 = vsyncpa %s588, 1

</llo_original>
